<compile_context>
chip_gen: v6e
topology: v6e:2x2x1
jax: 0.10.0
libtpu: 0.0.40
codegen_flags: <defaults>
</compile_context>

<pallas_src>
import jax
import jax.numpy as jnp
from jax.experimental import pallas as pl
from jax.experimental.pallas import tpu as pltpu

LANE = 128  # TPU lane width; output/action dim padded to this for dense stores


def policy_net_kernel(x_ref, w1_ref, b1_ref, w2_ref, b2_ref, o_ref):
    # One batch tile per grid step; weights are VMEM-resident across steps.
    x = x_ref[...]            # [TB, S]   f32
    w1 = w1_ref[...]          # [S, H]
    b1 = b1_ref[...]          # [1, H]
    w2 = w2_ref[...]          # [H, A_pad]
    b2 = b2_ref[...]          # [1, A_pad]  (padded cols biased to -1e30)

    # fc1 + ReLU (MXU matmul, VPU elementwise)
    h = jnp.dot(x, w1, preferred_element_type=jnp.float32) + b1
    h = jnp.maximum(h, 0.0)

    # fc2 -> padded logits [TB, A_pad]; padded columns are ~-1e30
    logits = jnp.dot(h, w2, preferred_element_type=jnp.float32) + b2

    # Numerically stable softmax over the (padded) action axis.
    # exp(-1e30 - m) == 0, so padded lanes contribute nothing to the sum.
    m = jnp.max(logits, axis=-1, keepdims=True)
    e = jnp.exp(logits - m)
    denom = jnp.sum(e, axis=-1, keepdims=True)
    # EUP reciprocal: off the VPU critical path, ~1e-3 relative error.
    o_ref[...] = (e * pl.reciprocal(denom, approx=True)).astype(o_ref.dtype)


def _round_up(n, m):
    return ((n + m - 1) // m) * m


def policy_net_forward(x, w1, b1, w2, b2, *, tb=256):
    """softmax(relu(x @ w1 + b1) @ w2 + b2, axis=1) via one Pallas call."""
    B, S = x.shape
    H = w1.shape[1]
    A = w2.shape[1]

    # --- Batch tiling: TB multiple of 8, pad B up to a multiple of TB. ------
    TB = min(tb, _round_up(max(B, 1), 8))
    B_pad = _round_up(B, TB)
    if B_pad != B:
        x = jnp.pad(x, ((0, B_pad - B), (0, 0)))

    # --- Lane-dense output: pad action dim to 128 lanes. --------------------
    A_pad = _round_up(A, LANE)
    # Zero weight columns + very negative bias => padded logits ~ -1e30,
    # which softmax maps to exactly 0 after exp(logit - max).
    w2_pad = jnp.pad(w2, ((0, 0), (0, A_pad - A)))
    b2_pad = jnp.pad(b2.reshape(1, A), ((0, 0), (0, A_pad - A)),
                     constant_values=-1e30)
    b1_2d = b1.reshape(1, H)

    grid = (B_pad // TB,)

    out_pad = pl.pallas_call(
        policy_net_kernel,
        out_shape=jax.ShapeDtypeStruct((B_pad, A_pad), jnp.float32),
        grid_spec=pltpu.PrefetchScalarGridSpec(
            num_scalar_prefetch=0,
            grid=grid,
            in_specs=[
                # x: one (TB, S) tile per grid step (double-buffered by Pallas)
                pl.BlockSpec((TB, S), lambda i: (i, 0)),
                # weights/biases: same block every step -> VMEM-resident
                pl.BlockSpec((S, H), lambda i: (0, 0)),
                pl.BlockSpec((1, H), lambda i: (0, 0)),
                pl.BlockSpec((H, A_pad), lambda i: (0, 0)),
                pl.BlockSpec((1, A_pad), lambda i: (0, 0)),
            ],
            # Lane-dense (TB, 128k) output tile -> unmasked vector stores.
            out_specs=pl.BlockSpec((TB, A_pad), lambda i: (i, 0)),
        ),
        compiler_params=pltpu.CompilerParams(
            # Batch axis is independent -> shard across TCs on v7x.
            dimension_semantics=("parallel",),
        ),
    )(x, w1, b1_2d, w2_pad, b2_pad)

    # Strip batch + action padding.
    return out_pad[:B, :A]


def reference_forward(x, w1, b1, w2, b2):
    h = jnp.maximum(x @ w1 + b1, 0.0)
    logits = h @ w2 + b2
    return jax.nn.softmax(logits, axis=1)


if __name__ == "__main__":
    # Small shapes consistent with PolicyNet(state_dim, hidden_dim, action_dim)
    B, STATE_DIM, HIDDEN_DIM, ACTION_DIM = 2, 4, 32, 8

    key = jax.random.PRNGKey(0)
    kx, k1, kb1, k2, kb2 = jax.random.split(key, 5)

    x = jax.random.normal(kx, (B, STATE_DIM), dtype=jnp.float32)
    # Deterministic, PyTorch-Linear-shaped params (stored transposed: [in, out]).
    w1 = jax.random.normal(k1, (STATE_DIM, HIDDEN_DIM), dtype=jnp.float32) * 0.1
    b1 = jax.random.normal(kb1, (HIDDEN_DIM,), dtype=jnp.float32) * 0.1
    w2 = jax.random.normal(k2, (HIDDEN_DIM, ACTION_DIM), dtype=jnp.float32) * 0.1
    b2 = jax.random.normal(kb2, (ACTION_DIM,), dtype=jnp.float32) * 0.1

    # --- Tiny demo batch (B=2): exercises batch padding to one 8-row tile. ---
    out = policy_net_forward(x, w1, b1, w2, b2)
    out = jax.block_until_ready(out)
    ref = reference_forward(x, w1, b1, w2, b2)
    assert out.shape == (B, ACTION_DIM)
    # approx reciprocal -> ~1e-3 relative error budget
    assert jnp.allclose(out, ref, atol=2e-3, rtol=2e-3)
    assert jnp.allclose(jnp.sum(out, axis=1), jnp.ones((B,)), atol=2e-3)

    # --- Multi-tile batch (B=300, TB=256 -> 2 grid steps + padding). ---------
    B2 = 300
    x2 = jax.random.normal(jax.random.PRNGKey(1), (B2, STATE_DIM),
                           dtype=jnp.float32)
    out2 = jax.block_until_ready(policy_net_forward(x2, w1, b1, w2, b2))
    ref2 = reference_forward(x2, w1, b1, w2, b2)
    assert out2.shape == (B2, ACTION_DIM)
    assert jnp.allclose(out2, ref2, atol=2e-3, rtol=2e-3)
    assert jnp.allclose(jnp.sum(out2, axis=1), jnp.ones((B2,)), atol=2e-3)

    print("KERNEL_OK")
</pallas_src>

<mosaic_0001>
module attributes {stable_mosaic.version = 11 : i64} {
  func.func @policy_net_kernel(%arg0: i32, %arg1: memref<8x4xf32, #tpu.memory_space<vmem>>, %arg2: memref<4x32xf32, #tpu.memory_space<vmem>>, %arg3: memref<1x32xf32, #tpu.memory_space<vmem>>, %arg4: memref<32x128xf32, #tpu.memory_space<vmem>>, %arg5: memref<1x128xf32, #tpu.memory_space<vmem>>, %arg6: memref<8x128xf32, #tpu.memory_space<vmem>>) attributes {dimension_semantics = [#tpu.dimension_semantics<parallel>], iteration_bounds = array<i64: 1>, scalar_prefetch = 0 : i64, scratch_operands = 0 : i64, tpu.core_type = #tpu.core_type<tc>, window_params = [{transform_indices = @transform_0, window_bounds = array<i64: 8, 4>}, {pipeline_mode = #tpu.pipeline_mode<synchronous>, transform_indices = @transform_1, window_bounds = array<i64: 4, 32>}, {pipeline_mode = #tpu.pipeline_mode<synchronous>, transform_indices = @transform_2, window_bounds = array<i64: 1, 32>}, {pipeline_mode = #tpu.pipeline_mode<synchronous>, transform_indices = @transform_3, window_bounds = array<i64: 32, 128>}, {pipeline_mode = #tpu.pipeline_mode<synchronous>, transform_indices = @transform_4, window_bounds = array<i64: 1, 128>}, {transform_indices = @transform_5, window_bounds = array<i64: 8, 128>}]} {
    %c0 = arith.constant 0 : index
    %c0_0 = arith.constant 0 : index
    %0 = vector.load %arg1[%c0, %c0_0] : memref<8x4xf32, #tpu.memory_space<vmem>>, vector<8x4xf32>
    %c0_1 = arith.constant 0 : index
    %c0_2 = arith.constant 0 : index
    %1 = vector.load %arg2[%c0_1, %c0_2] : memref<4x32xf32, #tpu.memory_space<vmem>>, vector<4x32xf32>
    %c0_3 = arith.constant 0 : index
    %c0_4 = arith.constant 0 : index
    %2 = vector.load %arg3[%c0_3, %c0_4] : memref<1x32xf32, #tpu.memory_space<vmem>>, vector<1x32xf32>
    %c0_5 = arith.constant 0 : index
    %c0_6 = arith.constant 0 : index
    %3 = vector.load %arg4[%c0_5, %c0_6] : memref<32x128xf32, #tpu.memory_space<vmem>>, vector<32x128xf32>
    %c0_7 = arith.constant 0 : index
    %c0_8 = arith.constant 0 : index
    %4 = vector.load %arg5[%c0_7, %c0_8] : memref<1x128xf32, #tpu.memory_space<vmem>>, vector<1x128xf32>
    %cst = arith.constant dense<0.000000e+00> : vector<8x32xf32>
    %5 = tpu.matmul %0, %1, %cst {dimension_numbers = #tpu.dot_dimension_numbers<[1], [0], [0], [1], [0, 0, 1, 1], [], []>} : vector<8x4xf32>, vector<4x32xf32>, vector<8x32xf32> -> vector<8x32xf32>
    %6 = vector.broadcast %2 : vector<1x32xf32> to vector<8x32xf32>
    %7 = arith.addf %5, %6 : vector<8x32xf32>
    %cst_9 = arith.constant 0.000000e+00 : f32
    %8 = vector.broadcast %cst_9 : f32 to vector<8x32xf32>
    %9 = arith.maximumf %7, %8 : vector<8x32xf32>
    %cst_10 = arith.constant dense<0.000000e+00> : vector<8x128xf32>
    %10 = tpu.matmul %9, %3, %cst_10 {dimension_numbers = #tpu.dot_dimension_numbers<[1], [0], [0], [1], [0, 0, 1, 1], [], []>} : vector<8x32xf32>, vector<32x128xf32>, vector<8x128xf32> -> vector<8x128xf32>
    %11 = vector.broadcast %4 : vector<1x128xf32> to vector<8x128xf32>
    %12 = arith.addf %10, %11 : vector<8x128xf32>
    %cst_11 = arith.constant dense<0xFF800000> : vector<8xf32>
    %13 = vector.multi_reduction <maximumf>, %12, %cst_11 [1] : vector<8x128xf32> to vector<8xf32>
    %14 = vector.shape_cast %13 : vector<8xf32> to vector<8x1xf32>
    %15 = vector.broadcast %14 : vector<8x1xf32> to vector<8x128xf32>
    %16 = arith.subf %12, %15 : vector<8x128xf32>
    %17 = math.exp %16 : vector<8x128xf32>
    %cst_12 = arith.constant dense<0.000000e+00> : vector<8xf32>
    %18 = vector.multi_reduction <add>, %17, %cst_12 [1] : vector<8x128xf32> to vector<8xf32>
    %19 = vector.shape_cast %18 : vector<8xf32> to vector<8x1xf32>
    %20 = tpu.reciprocal %19 {approx = true} : vector<8x1xf32> -> vector<8x1xf32>
    %21 = vector.broadcast %20 : vector<8x1xf32> to vector<8x128xf32>
    %22 = arith.mulf %17, %21 : vector<8x128xf32>
    %c0_13 = arith.constant 0 : index
    %c0_14 = arith.constant 0 : index
    %23 = vector.load %arg6[%c0_13, %c0_14] : memref<8x128xf32, #tpu.memory_space<vmem>>, vector<8x128xf32>
    tpu.vector_store %arg6[%c0_13, %c0_14], %22 {strides = array<i32>} : memref<8x128xf32, #tpu.memory_space<vmem>>, vector<8x128xf32>,
    return
  }
  func.func @transform_0(%arg0: i32) -> (i32, i32) {
    %c0_i32 = arith.constant 0 : i32
    %c0_i32_0 = arith.constant 0 : i32
    return %arg0, %c0_i32 : i32, i32
  }
  func.func @transform_1(%arg0: i32) -> (i32, i32) {
    %c0_i32 = arith.constant 0 : i32
    %c0_i32_0 = arith.constant 0 : i32
    %c0_i32_1 = arith.constant 0 : i32
    return %c0_i32, %c0_i32_0 : i32, i32
  }
  func.func @transform_2(%arg0: i32) -> (i32, i32) {
    %c0_i32 = arith.constant 0 : i32
    %c0_i32_0 = arith.constant 0 : i32
    %c0_i32_1 = arith.constant 0 : i32
    return %c0_i32, %c0_i32_0 : i32, i32
  }
  func.func @transform_3(%arg0: i32) -> (i32, i32) {
    %c0_i32 = arith.constant 0 : i32
    %c0_i32_0 = arith.constant 0 : i32
    %c0_i32_1 = arith.constant 0 : i32
    return %c0_i32, %c0_i32_0 : i32, i32
  }
  func.func @transform_4(%arg0: i32) -> (i32, i32) {
    %c0_i32 = arith.constant 0 : i32
    %c0_i32_0 = arith.constant 0 : i32
    %c0_i32_1 = arith.constant 0 : i32
    return %c0_i32, %c0_i32_0 : i32, i32
  }
  func.func @transform_5(%arg0: i32) -> (i32, i32) {
    %c0_i32 = arith.constant 0 : i32
    %c0_i32_0 = arith.constant 0 : i32
    return %arg0, %c0_i32 : i32, i32
  }
}

</mosaic_0001>

<llo_original>
// kernel: tpu_custom_call.1
$region0: #{tpu_custom_call.1}
  #allocation0 [shape = 'u32[]', space=smem, size = 0x4, offset = 0x4, fixed_abs, tag = 'smem constant byte address 0x4 - core index']
  #allocation1 [shape = 'u32[144,128]{1,0:T(1,128)}', space=vmem, size = 0x12000, scoped, tag = 'internal scratch']
  %s0 = inlined_call_operand.vmem [shape: f32[8,4], index: 0, kind: input, shape index: {}]
  %s1 = inlined_call_operand.vmem [shape: f32[4,32], index: 1, kind: input, shape index: {}]
  %s2 = inlined_call_operand.vmem [shape: f32[1,32], index: 2, kind: input, shape index: {}]
  %s3 = inlined_call_operand.hbm [shape: f32[32,128], index: 3, kind: input, shape index: {}]
  %s4 = inlined_call_operand.vmem [shape: f32[1,128], index: 4, kind: input, shape index: {}]
  %s5 = inlined_call_operand.hbm [shape: f32[8,128], index: 5, kind: output, shape index: {}]
  %s6 = sld [smem:[#allocation0]]
  $region34: #{tpu_custom_call.1} parent=0
    _
  %s8 = ssub.s32 1, %s6
  %s9 = scalar_select 0, %s8, %s6
  $region1: #{tpu_custom_call.1} parent=0
    #allocation2 [shape = 'u8[16384]{0}', space=vmem, size = 0x4000, scoped, tag = 'input window, operand 3, single buffered']
    #allocation3 [shape = 's32[1]{0}', space=sflag, size = 0x4, scoped, tag = 'scoped memory for tpu_custom_call.1']
    #allocation4 [shape = 's32[1]{0}', space=sflag, size = 0x4, scoped, tag = 'scoped memory for tpu_custom_call.1']
    #allocation5 [shape = 'u8[4096]{0}', space=vmem, size = 0x1000, scoped, tag = 'output window, operand 0, single buffered']
    %10 = vsyncpa [#allocation3], 0
    %11 = vsyncpa [#allocation4], 0
    // Predicated region
    $region2: #{tpu_custom_call.1} parent=1 // pred_check
      _
    $region3: #{tpu_custom_call.1} parent=1 // pred_check_branch
      %13 = sbr.rel (0) target = $region5
    $region4: #{tpu_custom_call.1} parent=1 // pred_region
      _
    $region5: #{tpu_custom_call.1} parent=1 // pred_fallthru
      _
    // Predicated region
    $region6: #{tpu_custom_call.1} parent=1 // pred_check
      _
    $region7: #{tpu_custom_call.1} parent=1 // pred_check_branch
      %15 = sbr.rel (0) target = $region9
    $region8: #{tpu_custom_call.1} parent=1 // pred_region
      _
    $region9: #{tpu_custom_call.1} parent=1 // pred_fallthru
      _
    // Predicated region
    $region10: #{tpu_custom_call.1} parent=1 // pred_check
      _
    $region11: #{tpu_custom_call.1} parent=1 // pred_check_branch
      %17 = sbr.rel (0) target = $region13
    $region12: #{tpu_custom_call.1} parent=1 // pred_region
      _
    $region13: #{tpu_custom_call.1} parent=1 // pred_fallthru
      _
    // Predicated region
    $region14: #{tpu_custom_call.1} parent=1 // pred_check
      _
    $region15: #{tpu_custom_call.1} parent=1 // pred_check_branch
      %19 = sbr.rel (0) target = $region17
    $region16: #{tpu_custom_call.1} parent=1 // pred_region
      %s21 = ssub.s32 512, 512
      %22 = vsyncadd [#allocation3], %s21
      %s23 = sshll.u32 [#allocation2], 4
      %s24 = int_to_ptr.vmem [resolvable:$true] %s23
      %29 = dma.hbm_to_vmem [thread:$0]  %s3, 512, %s24, [#allocation3], 128, 128, 8
    $region17: #{tpu_custom_call.1} parent=1 // pred_fallthru
      _
    // Predicated region
    $region18: #{tpu_custom_call.1} parent=1 // pred_check
      _
    $region19: #{tpu_custom_call.1} parent=1 // pred_check_branch
      %31 = sbr.rel (0) target = $region21
    $region20: #{tpu_custom_call.1} parent=1 // pred_region
      _
    $region21: #{tpu_custom_call.1} parent=1 // pred_fallthru
      _
    // Predicated region
    $region22: #{tpu_custom_call.1} parent=1 // pred_check
      _
    $region23: #{tpu_custom_call.1} parent=1 // pred_check_branch
      %33 = sbr.rel (0) target = $region25
    $region24: #{tpu_custom_call.1} parent=1 // pred_region
      %34 = dma.done [#allocation3], 512
    $region25: #{tpu_custom_call.1} parent=1 // pred_fallthru
      _
    %v35 = vld [vmem:[%s0] sm:$0xff]
    %v36 = vld [vmem:[%s1] sm:$0xf]
    %v37 = vld [vmem:[%s2] sm:$0x1]
    %v38 = vld [vmem:[#allocation2] sm:$0xff]
    %v39 = vld [vmem:[#allocation2 + $0x8] sm:$0xff]
    %v40 = vld [vmem:[#allocation2 + $0x10] sm:$0xff]
    %v41 = vld [vmem:[#allocation2 + $0x18] sm:$0xff]
    %v42 = vld [vmem:[%s4] sm:$0x1]
    %v44 = vlaneseq
    %v45 = vshrl.u32 %v44, 7
    %v46 = vsub.s32 0, %v45
    %v47 = vrot.slane %v37, %v46
    %vm49 = vcmask 31744
    %v51 = vsel %vm49, %v35, 0
    %vm53 = vcmask 1043456
    %v55 = vsel %vm53, %v36, 0
    %57 = vmatprep.subr.mxu0 0.0
    %58 = vmatpush1.msra.mxu0 0.0
    %59 = vmatprep.subr.mxu0 0.0
    %60 = vmatpush1.msra.mxu0 0.0
    %61 = vmatprep.subr.mxu0 0.0
    %62 = vmatpush1.msra.mxu0 0.0
    %63 = vmatprep.subr.mxu0 0.0
    %64 = vmatpush1.msra.mxu0 0.0
    %65 = vmatprep.subr.mxu0 0.0
    %66 = vmatpush1.msra.mxu0 0.0
    %67 = vmatprep.subr.mxu0 0.0
    %68 = vmatpush1.msra.mxu0 0.0
    %69 = vmatprep.subr.mxu0 0.0
    %70 = vmatpush1.msra.mxu0 0.0
    %71 = vmatprep.subr.mxu0 0.0
    %72 = vmatpush1.msra.mxu0 0.0
    %73 = vmatprep.subr.mxu0 0.0
    %74 = vmatpush1.msra.mxu0 0.0
    %75 = vmatprep.subr.mxu0 0.0
    %76 = vmatpush1.msra.mxu0 0.0
    %77 = vmatprep.subr.mxu0 0.0
    %78 = vmatpush1.msra.mxu0 0.0
    %79 = vmatprep.subr.mxu0 0.0
    %80 = vmatpush1.msra.mxu0 0.0
    %81 = vmatprep.subr.mxu0 0.0
    %82 = vmatpush1.msra.mxu0 0.0
    %83 = vmatprep.subr.mxu0 0.0
    %84 = vmatpush1.msra.mxu0 0.0
    %85 = vmatprep.subr.mxu0 0.0
    %86 = vmatpush1.msra.mxu0 0.0
    %87 = vmatprep.subr.mxu0 0.0
    %88 = vmatpush1.msra.mxu0 %v55
    %89 = vmatprep.subr.mxu0 0.0
    %90 = vmatpush2.msra.mxu0 0.0
    %91 = vmatprep.subr.mxu0 0.0
    %92 = vmatpush2.msra.mxu0 0.0
    %93 = vmatprep.subr.mxu0 0.0
    %94 = vmatpush2.msra.mxu0 0.0
    %95 = vmatprep.subr.mxu0 0.0
    %96 = vmatpush2.msra.mxu0 0.0
    %97 = vmatprep.subr.mxu0 0.0
    %98 = vmatpush2.msra.mxu0 0.0
    %99 = vmatprep.subr.mxu0 0.0
    %100 = vmatpush2.msra.mxu0 0.0
    %101 = vmatprep.subr.mxu0 0.0
    %102 = vmatpush2.msra.mxu0 0.0
    %103 = vmatprep.subr.mxu0 0.0
    %104 = vmatpush2.msra.mxu0 0.0
    %105 = vmatprep.subr.mxu0 0.0
    %106 = vmatpush2.msra.mxu0 0.0
    %107 = vmatprep.subr.mxu0 0.0
    %108 = vmatpush2.msra.mxu0 0.0
    %109 = vmatprep.subr.mxu0 0.0
    %110 = vmatpush2.msra.mxu0 0.0
    %111 = vmatprep.subr.mxu0 0.0
    %112 = vmatpush2.msra.mxu0 0.0
    %113 = vmatprep.subr.mxu0 0.0
    %114 = vmatpush2.msra.mxu0 0.0
    %115 = vmatprep.subr.mxu0 0.0
    %116 = vmatpush2.msra.mxu0 0.0
    %117 = vmatprep.subr.mxu0 0.0
    %118 = vmatpush2.msra.mxu0 0.0
    %119 = vmatprep.subr.mxu0 0.0
    %120 = vmatpush2.msra.mxu0 0.0
    %121 = vmatprep.mubr.f32.mxu0 0.0
    %122 = vmatmul.mubr.f32.gmra.mxu0 %v51
    %v123 = vpop.f32.mrf.mxu0
    %v124 = vadd.f32 %v47, %v123
    %v125 = vpop.f32.mrf.mxu0
    %126 = vdwg.mxu0
    %v127 = vmax.f32 %v124, 0.0
    %v129 = vlaneseq
    %v130 = vshrl.u32 %v129, 7
    %v131 = vsub.s32 0, %v130
    %v132 = vrot.slane %v42, %v131
    %vm134 = vcmask 261120
    %v136 = vsel %vm134, %v127, 0
    %138 = vmatprep.subr.mxu0 0.0
    %139 = vmatpush1.msra.mxu0 0.0
    %140 = vmatprep.subr.mxu0 0.0
    %141 = vmatpush1.msra.mxu0 0.0
    %142 = vmatprep.subr.mxu0 0.0
    %143 = vmatpush1.msra.mxu0 0.0
    %144 = vmatprep.subr.mxu0 0.0
    %145 = vmatpush1.msra.mxu0 0.0
    %146 = vmatprep.subr.mxu0 0.0
    %147 = vmatpush1.msra.mxu0 0.0
    %148 = vmatprep.subr.mxu0 0.0
    %149 = vmatpush1.msra.mxu0 0.0
    %150 = vmatprep.subr.mxu0 0.0
    %151 = vmatpush1.msra.mxu0 0.0
    %152 = vmatprep.subr.mxu0 0.0
    %153 = vmatpush1.msra.mxu0 0.0
    %154 = vmatprep.subr.mxu0 0.0
    %155 = vmatpush1.msra.mxu0 0.0
    %156 = vmatprep.subr.mxu0 0.0
    %157 = vmatpush1.msra.mxu0 0.0
    %158 = vmatprep.subr.mxu0 0.0
    %159 = vmatpush1.msra.mxu0 0.0
    %160 = vmatprep.subr.mxu0 0.0
    %161 = vmatpush1.msra.mxu0 0.0
    %162 = vmatprep.subr.mxu0 0.0
    %163 = vmatpush1.msra.mxu0 %v41
    %164 = vmatprep.subr.mxu0 0.0
    %165 = vmatpush1.msra.mxu0 %v40
    %166 = vmatprep.subr.mxu0 0.0
    %167 = vmatpush1.msra.mxu0 %v39
    %168 = vmatprep.subr.mxu0 0.0
    %169 = vmatpush1.msra.mxu0 %v38
    %170 = vmatprep.subr.mxu0 0.0
    %171 = vmatpush2.msra.mxu0 0.0
    %172 = vmatprep.subr.mxu0 0.0
    %173 = vmatpush2.msra.mxu0 0.0
    %174 = vmatprep.subr.mxu0 0.0
    %175 = vmatpush2.msra.mxu0 0.0
    %176 = vmatprep.subr.mxu0 0.0
    %177 = vmatpush2.msra.mxu0 0.0
    %178 = vmatprep.subr.mxu0 0.0
    %179 = vmatpush2.msra.mxu0 0.0
    %180 = vmatprep.subr.mxu0 0.0
    %181 = vmatpush2.msra.mxu0 0.0
    %182 = vmatprep.subr.mxu0 0.0
    %183 = vmatpush2.msra.mxu0 0.0
    %184 = vmatprep.subr.mxu0 0.0
    %185 = vmatpush2.msra.mxu0 0.0
    %186 = vmatprep.subr.mxu0 0.0
    %187 = vmatpush2.msra.mxu0 0.0
    %188 = vmatprep.subr.mxu0 0.0
    %189 = vmatpush2.msra.mxu0 0.0
    %190 = vmatprep.subr.mxu0 0.0
    %191 = vmatpush2.msra.mxu0 0.0
    %192 = vmatprep.subr.mxu0 0.0
    %193 = vmatpush2.msra.mxu0 0.0
    %194 = vmatprep.subr.mxu0 0.0
    %195 = vmatpush2.msra.mxu0 0.0
    %196 = vmatprep.subr.mxu0 0.0
    %197 = vmatpush2.msra.mxu0 0.0
    %198 = vmatprep.subr.mxu0 0.0
    %199 = vmatpush2.msra.mxu0 0.0
    %200 = vmatprep.subr.mxu0 0.0
    %201 = vmatpush2.msra.mxu0 0.0
    %202 = vmatprep.mubr.f32.mxu0 0.0
    %203 = vmatmul.mubr.f32.gmra.mxu0 %v136
    %v204 = vpop.f32.mrf.mxu0
    %v205 = vadd.f32 %v132, %v204
    %v206 = vpop.f32.mrf.mxu0
    %207 = vdwg.mxu0
    %208 = vmax.xlane.f32.xlu0 %v205
    %v209 = vpop.xlane.xlu0 %208
    %v210 = vsub.f32 %v205, %v209
    %v211 = vmul.f32 %v210, 1.442695
    %v212 = vpow.pop %v211
    %213 = vadd.xlane.f32.xlu0 %v212
    %v214 = vpop.xlane.xlu0 %213
    %v215 = vrcp.pop %v214
    %v216 = vmul.f32 %v212, %v215
    %217 = vst [vmem:[#allocation5] sm:$0xff] %v216
    // Predicated region
    $region26: #{tpu_custom_call.1} parent=1 // pred_check
      _
    $region27: #{tpu_custom_call.1} parent=1 // pred_check_branch
      %219 = sbr.rel (0) target = $region29
    $region28: #{tpu_custom_call.1} parent=1 // pred_region
      %s221 = ssub.s32 128, 128
      %222 = vsyncadd [#allocation4], %s221
      %s224 = sshll.u32 [#allocation5], 4
      %s225 = int_to_ptr.vmem [resolvable:$true] %s224
      %227 = dma.vmem_to_hbm [thread:$0]  %s225, 128, %s5, [#allocation4]
    $region29: #{tpu_custom_call.1} parent=1 // pred_fallthru
      _
    // Predicated region
    $region30: #{tpu_custom_call.1} parent=1 // pred_check
      _
    $region31: #{tpu_custom_call.1} parent=1 // pred_check_branch
      %229 = sbr.rel (0) target = $region33
    $region32: #{tpu_custom_call.1} parent=1 // pred_region
      %230 = dma.done [#allocation4], 128
    $region33: #{tpu_custom_call.1} parent=1 // pred_fallthru
      _
    %231 = vsyncpa [#allocation3], 1
    %232 = vsyncpa [#allocation4], 1

</llo_original>
